<compile_context>
chip_gen: v7x
topology: tpu7x:2x2x1
jax: 0.10.0
libtpu: 0.0.40
codegen_flags: <defaults>
</compile_context>

<pallas_src>
import jax
import jax.numpy as jnp
from jax.experimental import pallas as pl
from jax.experimental.pallas import tpu as pltpu


def decoder_kernel(x_ref, w_ref, b_ref, gamma_ref, beta_ref, rnd_ref, o_ref):
    # ---- Linear (MXU): bf16 x bf16 -> f32 accumulate ----
    y = jnp.dot(x_ref[...], w_ref[...], preferred_element_type=jnp.float32)
    y = y + b_ref[...]                                   # [B, TN] f32

    # ---- BatchNorm1d (training mode: batch stats, biased variance, eps=1e-5) ----
    # Fused single pass: mean and E[y^2] in one sweep, var = E[y^2] - mean^2.
    inv_b = 1.0 / y.shape[0]
    mean = jnp.sum(y, axis=0, keepdims=True) * inv_b          # [1, TN]
    mean_sq = jnp.sum(y * y, axis=0, keepdims=True) * inv_b   # [1, TN]
    var = mean_sq - mean * mean
    y = (y - mean) * jax.lax.rsqrt(var + 1e-5)
    y = y * gamma_ref[...] + beta_ref[...]

    # ---- ReLU ----
    y = jnp.maximum(y, 0.0)

    # ---- Dropout p=0.5 (inverted scaling): keep where random int32 sign bit is 0 ----
    keep = rnd_ref[...] >= 0                                  # P(keep) = 0.5
    y = jnp.where(keep, y + y, 0.0)                           # y*2 folded into add

    o_ref[...] = y.astype(o_ref.dtype)


def decoder_forward(x_bf16, w_t_bf16, b, gamma, beta, rnd_bits, *, tn=None):
    """x_bf16: [B, F_in] bf16; w_t_bf16: [F_in, F_out] bf16;
    b/gamma/beta: [1, F_out] f32; rnd_bits: [B, F_out] int32."""
    B, F_in = x_bf16.shape
    F_out = w_t_bf16.shape[1]

    if tn is None:
        # Lane-dense tile, multiple of 128; cap so (W tile + activations) * 2 buffers
        # stays well inside the 32 MiB scoped-VMEM budget (v7x-safe).
        tn = min(F_out, 512)
    assert F_out % tn == 0 and tn % 128 == 0

    grid = (F_out // tn,)
    return pl.pallas_call(
        decoder_kernel,
        out_shape=jax.ShapeDtypeStruct((B, F_out), jnp.float32),
        grid=grid,
        in_specs=[
            pl.BlockSpec((B, F_in), lambda j: (0, 0)),    # x: resident across tiles
            pl.BlockSpec((F_in, tn), lambda j: (0, j)),   # W tile (double-buffered)
            pl.BlockSpec((1, tn), lambda j: (0, j)),      # bias tile
            pl.BlockSpec((1, tn), lambda j: (0, j)),      # gamma tile
            pl.BlockSpec((1, tn), lambda j: (0, j)),      # beta tile
            pl.BlockSpec((B, tn), lambda j: (0, j)),      # dropout random bits tile
        ],
        out_specs=pl.BlockSpec((B, tn), lambda j: (0, j)),
        compiler_params=pltpu.CompilerParams(
            dimension_semantics=("parallel",),            # v7x: shard tiles across 2 TCs
            vmem_limit_bytes=32 * 1024 * 1024,
        ),
    )(x_bf16, w_t_bf16, b, gamma, beta, rnd_bits)


if __name__ == "__main__":
    # Small shapes consistent with the module: batch=8, input_dim=32, output_dim=128.
    B, input_dim, output_dim = 8, 32, 128

    key = jax.random.PRNGKey(0)
    kx, kw, kb, kd = jax.random.split(key, 4)

    x = jax.random.normal(kx, (B, input_dim), dtype=jnp.float32)

    # Deterministic parameter init (PyTorch-Linear-style uniform bound).
    bound = 1.0 / (input_dim ** 0.5)
    w = jax.random.uniform(kw, (output_dim, input_dim), jnp.float32, -bound, bound)
    b = jax.random.uniform(kb, (output_dim,), jnp.float32, -bound, bound)
    gamma = jnp.ones((output_dim,), jnp.float32)   # BatchNorm1d weight init
    beta = jnp.zeros((output_dim,), jnp.float32)   # BatchNorm1d bias init

    # Dropout random bits (host PRNG, deterministic); sign bit decides keep/drop.
    rnd_bits = jax.lax.bitcast_convert_type(
        jax.random.bits(kd, (B, output_dim), dtype=jnp.uint32), jnp.int32)

    out = decoder_forward(
        x.astype(jnp.bfloat16),               # bf16 into the MXU
        w.T.astype(jnp.bfloat16),             # [F_in, F_out], bf16
        b.reshape(1, output_dim),
        gamma.reshape(1, output_dim),
        beta.reshape(1, output_dim),
        rnd_bits,
    )
    out = jax.block_until_ready(out)

    # Lightweight sanity checks (dropout is stochastic, so check structural properties).
    assert out.shape == (B, output_dim)
    assert bool(jnp.all(out >= 0.0))          # relu + dropout-zeroing => non-negative
    assert bool(jnp.isfinite(out).all())

    print("KERNEL_OK")
</pallas_src>

<mosaic_0001>
module attributes {stable_mosaic.version = 11 : i64} {
  func.func @decoder_kernel(%arg0: i32, %arg1: memref<8x32xbf16, #tpu.memory_space<vmem>>, %arg2: memref<32x128xbf16, #tpu.memory_space<vmem>>, %arg3: memref<1x128xf32, #tpu.memory_space<vmem>>, %arg4: memref<1x128xf32, #tpu.memory_space<vmem>>, %arg5: memref<1x128xf32, #tpu.memory_space<vmem>>, %arg6: memref<8x128xi32, #tpu.memory_space<vmem>>, %arg7: memref<8x128xf32, #tpu.memory_space<vmem>>) attributes {dimension_semantics = [#tpu.dimension_semantics<parallel>], iteration_bounds = array<i64: 1>, scalar_prefetch = 0 : i64, scratch_operands = 0 : i64, tpu.core_type = #tpu.core_type<tc>, window_params = [{pipeline_mode = #tpu.pipeline_mode<synchronous>, transform_indices = @transform_0, window_bounds = array<i64: 8, 32>}, {transform_indices = @transform_1, window_bounds = array<i64: 32, 128>}, {transform_indices = @transform_2, window_bounds = array<i64: 1, 128>}, {transform_indices = @transform_3, window_bounds = array<i64: 1, 128>}, {transform_indices = @transform_4, window_bounds = array<i64: 1, 128>}, {transform_indices = @transform_5, window_bounds = array<i64: 8, 128>}, {transform_indices = @transform_6, window_bounds = array<i64: 8, 128>}]} {
    %c0 = arith.constant 0 : index
    %c0_0 = arith.constant 0 : index
    %0 = vector.load %arg1[%c0, %c0_0] : memref<8x32xbf16, #tpu.memory_space<vmem>>, vector<8x32xbf16>
    %c0_1 = arith.constant 0 : index
    %c0_2 = arith.constant 0 : index
    %1 = vector.load %arg2[%c0_1, %c0_2] : memref<32x128xbf16, #tpu.memory_space<vmem>>, vector<32x128xbf16>
    %cst = arith.constant dense<0.000000e+00> : vector<8x128xf32>
    %2 = tpu.matmul %0, %1, %cst {dimension_numbers = #tpu.dot_dimension_numbers<[1], [0], [0], [1], [0, 0, 1, 1], [], []>} : vector<8x32xbf16>, vector<32x128xbf16>, vector<8x128xf32> -> vector<8x128xf32>
    %c0_3 = arith.constant 0 : index
    %c0_4 = arith.constant 0 : index
    %3 = vector.load %arg3[%c0_3, %c0_4] : memref<1x128xf32, #tpu.memory_space<vmem>>, vector<1x128xf32>
    %4 = vector.broadcast %3 : vector<1x128xf32> to vector<8x128xf32>
    %5 = arith.addf %2, %4 : vector<8x128xf32>
    %cst_5 = arith.constant dense<0.000000e+00> : vector<128xf32>
    %6 = vector.multi_reduction <add>, %5, %cst_5 [0] : vector<8x128xf32> to vector<128xf32>
    %7 = vector.shape_cast %6 : vector<128xf32> to vector<1x128xf32>
    %cst_6 = arith.constant 1.250000e-01 : f32
    %8 = vector.broadcast %cst_6 : f32 to vector<1x128xf32>
    %9 = arith.mulf %7, %8 : vector<1x128xf32>
    %10 = arith.mulf %5, %5 : vector<8x128xf32>
    %cst_7 = arith.constant dense<0.000000e+00> : vector<128xf32>
    %11 = vector.multi_reduction <add>, %10, %cst_7 [0] : vector<8x128xf32> to vector<128xf32>
    %12 = vector.shape_cast %11 : vector<128xf32> to vector<1x128xf32>
    %cst_8 = arith.constant 1.250000e-01 : f32
    %13 = vector.broadcast %cst_8 : f32 to vector<1x128xf32>
    %14 = arith.mulf %12, %13 : vector<1x128xf32>
    %15 = arith.mulf %9, %9 : vector<1x128xf32>
    %16 = arith.subf %14, %15 : vector<1x128xf32>
    %17 = vector.broadcast %9 : vector<1x128xf32> to vector<8x128xf32>
    %18 = arith.subf %5, %17 : vector<8x128xf32>
    %cst_9 = arith.constant 9.99999974E-6 : f32
    %19 = vector.broadcast %cst_9 : f32 to vector<1x128xf32>
    %20 = arith.addf %16, %19 : vector<1x128xf32>
    %21 = math.rsqrt %20 : vector<1x128xf32>
    %22 = vector.broadcast %21 : vector<1x128xf32> to vector<8x128xf32>
    %23 = arith.mulf %18, %22 : vector<8x128xf32>
    %c0_10 = arith.constant 0 : index
    %c0_11 = arith.constant 0 : index
    %24 = vector.load %arg4[%c0_10, %c0_11] : memref<1x128xf32, #tpu.memory_space<vmem>>, vector<1x128xf32>
    %25 = vector.broadcast %24 : vector<1x128xf32> to vector<8x128xf32>
    %26 = arith.mulf %23, %25 : vector<8x128xf32>
    %c0_12 = arith.constant 0 : index
    %c0_13 = arith.constant 0 : index
    %27 = vector.load %arg5[%c0_12, %c0_13] : memref<1x128xf32, #tpu.memory_space<vmem>>, vector<1x128xf32>
    %28 = vector.broadcast %27 : vector<1x128xf32> to vector<8x128xf32>
    %29 = arith.addf %26, %28 : vector<8x128xf32>
    %cst_14 = arith.constant 0.000000e+00 : f32
    %30 = vector.broadcast %cst_14 : f32 to vector<8x128xf32>
    %31 = arith.maximumf %29, %30 : vector<8x128xf32>
    %c0_15 = arith.constant 0 : index
    %c0_16 = arith.constant 0 : index
    %32 = vector.load %arg6[%c0_15, %c0_16] : memref<8x128xi32, #tpu.memory_space<vmem>>, vector<8x128xi32>
    %c0_i32 = arith.constant 0 : i32
    %33 = vector.broadcast %c0_i32 : i32 to vector<8x128xi32>
    %34 = arith.cmpi sge, %32, %33 : vector<8x128xi32>
    %35 = arith.addf %31, %31 : vector<8x128xf32>
    %cst_17 = arith.constant 0.000000e+00 : f32
    %36 = vector.broadcast %cst_17 : f32 to vector<8x128xf32>
    %37 = arith.select %34, %35, %36 : vector<8x128xi1>, vector<8x128xf32>
    %c0_18 = arith.constant 0 : index
    %c0_19 = arith.constant 0 : index
    %38 = vector.load %arg7[%c0_18, %c0_19] : memref<8x128xf32, #tpu.memory_space<vmem>>, vector<8x128xf32>
    tpu.vector_store %arg7[%c0_18, %c0_19], %37 {strides = array<i32>} : memref<8x128xf32, #tpu.memory_space<vmem>>, vector<8x128xf32>,
    return
  }
  func.func @transform_0(%arg0: i32) -> (i32, i32) {
    %c0_i32 = arith.constant 0 : i32
    %c0_i32_0 = arith.constant 0 : i32
    %c0_i32_1 = arith.constant 0 : i32
    return %c0_i32, %c0_i32_0 : i32, i32
  }
  func.func @transform_1(%arg0: i32) -> (i32, i32) {
    %c0_i32 = arith.constant 0 : i32
    %c0_i32_0 = arith.constant 0 : i32
    return %c0_i32, %arg0 : i32, i32
  }
  func.func @transform_2(%arg0: i32) -> (i32, i32) {
    %c0_i32 = arith.constant 0 : i32
    %c0_i32_0 = arith.constant 0 : i32
    return %c0_i32, %arg0 : i32, i32
  }
  func.func @transform_3(%arg0: i32) -> (i32, i32) {
    %c0_i32 = arith.constant 0 : i32
    %c0_i32_0 = arith.constant 0 : i32
    return %c0_i32, %arg0 : i32, i32
  }
  func.func @transform_4(%arg0: i32) -> (i32, i32) {
    %c0_i32 = arith.constant 0 : i32
    %c0_i32_0 = arith.constant 0 : i32
    return %c0_i32, %arg0 : i32, i32
  }
  func.func @transform_5(%arg0: i32) -> (i32, i32) {
    %c0_i32 = arith.constant 0 : i32
    %c0_i32_0 = arith.constant 0 : i32
    return %c0_i32, %arg0 : i32, i32
  }
  func.func @transform_6(%arg0: i32) -> (i32, i32) {
    %c0_i32 = arith.constant 0 : i32
    %c0_i32_0 = arith.constant 0 : i32
    return %c0_i32, %arg0 : i32, i32
  }
}

</mosaic_0001>

<llo_original>
// kernel: tpu_custom_call.1
$region0: #{tpu_custom_call.1}
  #allocation0 [shape = 'u32[]', space=smem, size = 0x4, offset = 0x4, fixed_abs, tag = 'smem constant byte address 0x4 - core index']
  #allocation1 [shape = 'u32[144,128]{1,0:T(1,128)}', space=vmem, size = 0x12000, scoped, tag = 'internal scratch']
  %s0 = inlined_call_operand.hbm [shape: bf16[8,32], index: 0, kind: input, shape index: {}]
  %s1 = inlined_call_operand.hbm [shape: bf16[32,128], index: 1, kind: input, shape index: {}]
  %s2 = inlined_call_operand.vmem [shape: f32[1,128], index: 2, kind: input, shape index: {}]
  %s3 = inlined_call_operand.vmem [shape: f32[1,128], index: 3, kind: input, shape index: {}]
  %s4 = inlined_call_operand.vmem [shape: f32[1,128], index: 4, kind: input, shape index: {}]
  %s5 = inlined_call_operand.vmem [shape: s32[8,128], index: 5, kind: input, shape index: {}]
  %s6 = inlined_call_operand.hbm [shape: f32[8,128], index: 6, kind: output, shape index: {}]
  %s7 = sld [smem:[#allocation0]]
  $region42: #{tpu_custom_call.1} parent=0
    _
  %s9 = ssub.s32 1, %s7
  %s10 = scalar_select 0, %s9, %s7
  $region1: #{tpu_custom_call.1} parent=0
    #allocation2 [shape = 'u8[2048]{0}', space=vmem, size = 0x800, scoped, tag = 'input window, operand 0, single buffered']
    #allocation3 [shape = 's32[1]{0}', space=sflag, size = 0x4, scoped, tag = 'scoped memory for tpu_custom_call.1']
    #allocation4 [shape = 's32[1]{0}', space=sflag, size = 0x4, scoped, tag = 'scoped memory for tpu_custom_call.1']
    #allocation5 [shape = 'u8[8192]{0}', space=vmem, size = 0x2000, scoped, tag = 'input window, operand 1, single buffered']
    #allocation6 [shape = 's32[1]{0}', space=sflag, size = 0x4, scoped, tag = 'scoped memory for tpu_custom_call.1']
    #allocation7 [shape = 'u8[4096]{0}', space=vmem, size = 0x1000, scoped, tag = 'output window, operand 0, single buffered']
    %11 = vsyncpa [#allocation3], 0
    %12 = vsyncpa [#allocation6], 0
    %13 = vsyncpa [#allocation4], 0
    // Predicated region
    $region2: #{tpu_custom_call.1} parent=1 // pred_check
      _
    $region3: #{tpu_custom_call.1} parent=1 // pred_check_branch
      %15 = sbr.rel (0) target = $region5
    $region4: #{tpu_custom_call.1} parent=1 // pred_region
      %s17 = ssub.s32 64, 64
      %18 = vsyncadd [#allocation3], %s17
      %s20 = sshll.u32 [#allocation2], 4
      %s21 = int_to_ptr.vmem [resolvable:$true] %s20
      %23 = dma.hbm_to_vmem [thread:$0]  %s0, 64, %s21, [#allocation3]
    $region5: #{tpu_custom_call.1} parent=1 // pred_fallthru
      _
    // Predicated region
    $region6: #{tpu_custom_call.1} parent=1 // pred_check
      _
    $region7: #{tpu_custom_call.1} parent=1 // pred_check_branch
      %25 = sbr.rel (0) target = $region9
    $region8: #{tpu_custom_call.1} parent=1 // pred_region
      %s27 = ssub.s32 256, 256
      %28 = vsyncadd [#allocation6], %s27
      %s29 = sshll.u32 [#allocation5], 4
      %s30 = int_to_ptr.vmem [resolvable:$true] %s29
      %35 = dma.hbm_to_vmem [thread:$0]  %s1, 256, %s30, [#allocation6], 64, 64, 4
    $region9: #{tpu_custom_call.1} parent=1 // pred_fallthru
      _
    // Predicated region
    $region10: #{tpu_custom_call.1} parent=1 // pred_check
      _
    $region11: #{tpu_custom_call.1} parent=1 // pred_check_branch
      %37 = sbr.rel (0) target = $region13
    $region12: #{tpu_custom_call.1} parent=1 // pred_region
      _
    $region13: #{tpu_custom_call.1} parent=1 // pred_fallthru
      _
    // Predicated region
    $region14: #{tpu_custom_call.1} parent=1 // pred_check
      _
    $region15: #{tpu_custom_call.1} parent=1 // pred_check_branch
      %39 = sbr.rel (0) target = $region17
    $region16: #{tpu_custom_call.1} parent=1 // pred_region
      _
    $region17: #{tpu_custom_call.1} parent=1 // pred_fallthru
      _
    // Predicated region
    $region18: #{tpu_custom_call.1} parent=1 // pred_check
      _
    $region19: #{tpu_custom_call.1} parent=1 // pred_check_branch
      %41 = sbr.rel (0) target = $region21
    $region20: #{tpu_custom_call.1} parent=1 // pred_region
      _
    $region21: #{tpu_custom_call.1} parent=1 // pred_fallthru
      _
    // Predicated region
    $region22: #{tpu_custom_call.1} parent=1 // pred_check
      _
    $region23: #{tpu_custom_call.1} parent=1 // pred_check_branch
      %43 = sbr.rel (0) target = $region25
    $region24: #{tpu_custom_call.1} parent=1 // pred_region
      _
    $region25: #{tpu_custom_call.1} parent=1 // pred_fallthru
      _
    // Predicated region
    $region26: #{tpu_custom_call.1} parent=1 // pred_check
      _
    $region27: #{tpu_custom_call.1} parent=1 // pred_check_branch
      %45 = sbr.rel (0) target = $region29
    $region28: #{tpu_custom_call.1} parent=1 // pred_region
      %46 = dma.done [#allocation3], 64
    $region29: #{tpu_custom_call.1} parent=1 // pred_fallthru
      _
    // Predicated region
    $region30: #{tpu_custom_call.1} parent=1 // pred_check
      _
    $region31: #{tpu_custom_call.1} parent=1 // pred_check_branch
      %48 = sbr.rel (0) target = $region33
    $region32: #{tpu_custom_call.1} parent=1 // pred_region
      %49 = dma.done [#allocation6], 256
    $region33: #{tpu_custom_call.1} parent=1 // pred_fallthru
      _
    %v51 = vld [vmem:[#allocation2] sm:$0xf]
    %v52 = vld [vmem:[#allocation5] sm:$0xf]
    %v53 = vld [vmem:[#allocation5 + $0x4] sm:$0xf]
    %v54 = vld [vmem:[#allocation5 + $0x8] sm:$0xf]
    %v55 = vld [vmem:[#allocation5 + $0xc] sm:$0xf]
    %v56 = vld [vmem:[%s2] sm:$0x1]
    %v58 = vlaneseq
    %v59 = vshrl.u32 %v58, 7
    %v60 = vsub.s32 0, %v59
    %v61 = vrot.slane %v56, %v60
    %v67 = vunpack.c.l.b16 %v52
    %v68 = vunpack.c.l.b16 %v53
    %v69 = vunpack.c.l.b16 %v54
    %v70 = vunpack.c.l.b16 %v55
    %v71 = vpack.c.b16 %v68, %v67
    %v72 = vpack.c.b16 %v70, %v69
    %vm75 = vcmask 261120
    %v77 = vsel %vm75, %v51, 0
    %79 = vmatprep.subr.bf16.mxu0 0
    %80 = vmatpush1.bf16.msra.mxu0 %v71
    %81 = vmatprep.subr.bf16.mxu0 0
    %82 = vmatpush1.bf16.msra.mxu0 %v72
    %83 = vmatprep.subr.bf16.mxu0 0
    %84 = vmatpush1.bf16.msra.mxu0 0
    %85 = vmatprep.subr.bf16.mxu0 0
    %86 = vmatpush1.bf16.msra.mxu0 0
    %87 = vmatprep.subr.bf16.mxu0 0
    %88 = vmatpush1.bf16.msra.mxu0 0
    %89 = vmatprep.subr.bf16.mxu0 0
    %90 = vmatpush1.bf16.msra.mxu0 0
    %91 = vmatprep.subr.bf16.mxu0 0
    %92 = vmatpush1.bf16.msra.mxu0 0
    %93 = vmatprep.subr.bf16.mxu0 0
    %94 = vmatpush1.bf16.msra.mxu0 0
    %95 = vmatprep.subr.bf16.mxu0 0
    %96 = vmatpush1.bf16.msra.mxu0 0
    %97 = vmatprep.subr.bf16.mxu0 0
    %98 = vmatpush1.bf16.msra.mxu0 0
    %99 = vmatprep.subr.bf16.mxu0 0
    %100 = vmatpush1.bf16.msra.mxu0 0
    %101 = vmatprep.subr.bf16.mxu0 0
    %102 = vmatpush1.bf16.msra.mxu0 0
    %103 = vmatprep.subr.bf16.mxu0 0
    %104 = vmatpush1.bf16.msra.mxu0 0
    %105 = vmatprep.subr.bf16.mxu0 0
    %106 = vmatpush1.bf16.msra.mxu0 0
    %107 = vmatprep.subr.bf16.mxu0 0
    %108 = vmatpush1.bf16.msra.mxu0 0
    %109 = vmatprep.subr.bf16.mxu0 0
    %110 = vmatpush1.bf16.msra.mxu0 0
    %111 = vmatprep.mubr.bf16.mxu0 0
    %112 = vmatmul.mubr.bf16.gmra.mrb[0].mxu0 %v77
    %v113 = vpop.f32.mrb[0].mxu0
    %v114 = vadd.f32 %v61, %v113
    %v115 = vpop.f32.mrb[0].mxu0
    %v116 = vpop.f32.mrb[0].mxu0
    %v117 = vpop.f32.mrb[0].mxu0
    %118 = vdwg.mxu0
    %v119 = vrot.slane %v114, 4
    %v120 = vadd.f32 %v114, %v119
    %v121 = vrot.slane %v120, 2
    %v122 = vadd.f32 %v120, %v121
    %v123 = vrot.slane %v122, 1
    %v124 = vadd.f32 %v122, %v123
    %v125 = vmul.f32 %v124, 0.125
    %v126 = vmul.f32 %v114, %v114
    %v127 = vrot.slane %v126, 4
    %v128 = vadd.f32 %v126, %v127
    %v129 = vrot.slane %v128, 2
    %v130 = vadd.f32 %v128, %v129
    %v131 = vrot.slane %v130, 1
    %v132 = vadd.f32 %v130, %v131
    %v133 = vmul.f32 %v132, 0.125
    %v134 = vmul.f32 %v125, %v125
    %v135 = vsub.f32 %v133, %v134
    %v136 = vsub.f32 %v114, %v125
    %v137 = vadd.f32 %v135, 1e-05
    %v138 = vrsqrt.pop %v137
    %v139 = vmul.f32 %v136, %v138
    %v140 = vld [vmem:[%s3] sm:$0x1]
    %v142 = vlaneseq
    %v143 = vshrl.u32 %v142, 7
    %v144 = vsub.s32 0, %v143
    %v145 = vrot.slane %v140, %v144
    %v147 = vmul.f32 %v139, %v145
    %v148 = vld [vmem:[%s4] sm:$0x1]
    %v150 = vlaneseq
    %v151 = vshrl.u32 %v150, 7
    %v152 = vsub.s32 0, %v151
    %v153 = vrot.slane %v148, %v152
    %v155 = vadd.f32 %v147, %v153
    %v156 = vmax.f32 %v155, 0.0
    %v157 = vld [vmem:[%s5] sm:$0xff]
    %vm158 = vcmp.ge.s32.totalorder %v157, 0
    %v159 = vadd.f32 %v156, %v156
    %v160 = vsel %vm158, %v159, 0.0
    %161 = vst [vmem:[#allocation7] sm:$0xff] %v160
    // Predicated region
    $region34: #{tpu_custom_call.1} parent=1 // pred_check
      _
    $region35: #{tpu_custom_call.1} parent=1 // pred_check_branch
      %163 = sbr.rel (0) target = $region37
    $region36: #{tpu_custom_call.1} parent=1 // pred_region
      %s165 = ssub.s32 128, 128
      %166 = vsyncadd [#allocation4], %s165
      %s168 = sshll.u32 [#allocation7], 4
      %s169 = int_to_ptr.vmem [resolvable:$true] %s168
      %171 = dma.vmem_to_hbm [thread:$0]  %s169, 128, %s6, [#allocation4]
    $region37: #{tpu_custom_call.1} parent=1 // pred_fallthru
      _
    // Predicated region
    $region38: #{tpu_custom_call.1} parent=1 // pred_check
      _
    $region39: #{tpu_custom_call.1} parent=1 // pred_check_branch
      %173 = sbr.rel (0) target = $region41
    $region40: #{tpu_custom_call.1} parent=1 // pred_region
      %174 = dma.done [#allocation4], 128
    $region41: #{tpu_custom_call.1} parent=1 // pred_fallthru
      _
    %175 = vsyncpa [#allocation3], 1
    %176 = vsyncpa [#allocation6], 1
    %177 = vsyncpa [#allocation4], 1

</llo_original>
